<compile_context>
chip_gen: v5e
topology: v5e:2x2
jax: 0.10.0
libtpu: 0.0.40
codegen_flags: <defaults>
</compile_context>

<pallas_src>
import functools

import jax
import jax.numpy as jnp
from jax.experimental import pallas as pl
from jax.experimental.pallas import tpu as pltpu


_SENTINEL_1 = 1e17  # padding rows of set1
_SENTINEL_2 = 2e17  # padding cols of set2  (distinct, so pad-pad distance is huge too)


def _ahd_tile_kernel(x_ref, yt_ref, rowmin_ref, colmin_ref):
    """One (tn x tm) block of squared pairwise distances.

    Grid: (row tiles of set1 [parallel], column tiles of set2 [arbitrary]).
      rowmin_ref : (tn, 1)     running row-min over column tiles (resident across j)
      colmin_ref : (1, 1, tm)  column mins restricted to this row tile
    sqrt is deferred to the wrapper (monotone), so the hot path is pure
    VPU/XLU work in squared-distance space -- no EUP traffic, no masking.
    """
    j = pl.program_id(1)

    x = x_ref[...]      # (tn, d)
    yt = yt_ref[...]    # (d, tm)   set2 pre-transposed, lane-dense
    tn = x.shape[0]
    tm = yt.shape[1]
    d = x.shape[1]

    if d >= 8:
        # MXU path for larger feature dims: ||x||^2 + ||y||^2 - 2 x @ y^T.
        x2 = jnp.sum(x * x, axis=1, keepdims=True)              # (tn, 1)
        y2 = jnp.sum(yt * yt, axis=0, keepdims=True)            # (1, tm)
        xy = jnp.dot(x, yt, preferred_element_type=jnp.float32)  # (tn, tm)
        d2 = jnp.maximum(x2 + y2 - 2.0 * xy, 0.0)
    else:
        # Tiny D (e.g. 2-D point sets): per-coordinate accumulation on the VPU.
        d2 = jnp.zeros((tn, tm), jnp.float32)
        for k in range(d):
            diff = x[:, k:k + 1] - yt[k:k + 1, :]                # (tn, tm)
            d2 = d2 + diff * diff

    tile_rowmin = jnp.min(d2, axis=1, keepdims=True)             # (tn, 1)

    @pl.when(j == 0)
    def _():
        rowmin_ref[...] = jnp.full(rowmin_ref.shape, jnp.inf, rowmin_ref.dtype)

    rowmin_ref[...] = jnp.minimum(rowmin_ref[...], tile_rowmin)
    colmin_ref[...] = jnp.min(d2, axis=0, keepdims=True).reshape(1, 1, tm)


def _round_up(v, mult):
    return ((v + mult - 1) // mult) * mult


def averaged_hausdorff_loss(set1, set2, *, tn=256, tm=512):
    """Pallas equivalent of AveragedHausdorffLoss.forward(set1, set2)."""
    assert set1.ndim == 2, set1.shape
    assert set2.ndim == 2, set2.shape
    assert set1.shape[1] == set2.shape[1]
    n, d = set1.shape
    m, _ = set2.shape

    # Clamp tiles to the (sublane/lane-aligned) problem size, then pad.
    tn = min(tn, _round_up(max(n, 1), 8))
    tm = min(tm, _round_up(max(m, 1), 128))
    n_pad = _round_up(n, tn)
    m_pad = _round_up(m, tm)
    nr = n_pad // tn
    nc = m_pad // tm

    # Sentinel padding: padded rows/cols produce huge squared distances, so
    # they never win any min and no per-element masking is needed in-kernel.
    x = jnp.full((n_pad, d), _SENTINEL_1, jnp.float32).at[:n].set(
        set1.astype(jnp.float32))
    yt = jnp.full((d, m_pad), _SENTINEL_2, jnp.float32).at[:, :m].set(
        set2.astype(jnp.float32).T)

    rowmin_sq, colmin_sq = pl.pallas_call(
        _ahd_tile_kernel,
        out_shape=(
            jax.ShapeDtypeStruct((n_pad, 1), jnp.float32),       # row-min(d^2)
            jax.ShapeDtypeStruct((nr, 1, m_pad), jnp.float32),   # per-row-tile col-min(d^2)
        ),
        grid_spec=pltpu.PrefetchScalarGridSpec(
            num_scalar_prefetch=0,
            grid=(nr, nc),
            in_specs=[
                pl.BlockSpec((tn, d), lambda i, j: (i, 0)),      # set1 row tile
                pl.BlockSpec((d, tm), lambda i, j: (0, j)),      # set2^T col tile
            ],
            out_specs=[
                pl.BlockSpec((tn, 1), lambda i, j: (i, 0)),      # resident across j
                pl.BlockSpec((1, 1, tm), lambda i, j: (i, 0, j)),
            ],
        ),
        compiler_params=pltpu.CompilerParams(
            dimension_semantics=("parallel", "arbitrary")),
    )(x, yt)

    # Tiny epilogue in plain JAX: exactly N + M sqrts (deferred past the mins)
    # plus the cross-row-tile col-min fold, keeping the row axis megacore-safe.
    term_1 = jnp.sum(jnp.sqrt(rowmin_sq[:n, 0]))
    colmin_all = jnp.min(colmin_sq[:, 0, :], axis=0)             # (m_pad,)
    term_2 = jnp.sum(jnp.sqrt(colmin_all[:m]))
    return (term_1 + term_2) * 0.5


def _reference(set1, set2):
    diff = set1[:, None, :] - set2[None, :, :]
    dist = jnp.sqrt(jnp.sum(diff * diff, axis=-1))
    term_1 = jnp.sum(jnp.min(dist, axis=1))
    term_2 = jnp.sum(jnp.min(dist, axis=0))
    return (term_1 + term_2) * 0.5


if __name__ == "__main__":
    key = jax.random.PRNGKey(0)
    k1, k2 = jax.random.split(key)
    # Two unordered 2-D point sets (e.g. pixel coordinates), different sizes.
    set1 = jax.random.uniform(k1, (50, 2), dtype=jnp.float32) * 16.0
    set2 = jax.random.uniform(k2, (37, 2), dtype=jnp.float32) * 16.0

    loss = jax.jit(averaged_hausdorff_loss)(set1, set2)
    loss = jax.block_until_ready(loss)

    ref = _reference(set1, set2)
    assert jnp.abs(loss - ref) < 1e-3 * (1.0 + jnp.abs(ref)), (loss, ref)
    print("KERNEL_OK")
</pallas_src>

<mosaic_0001>
module attributes {stable_mosaic.version = 11 : i64} {
  func.func @_ahd_tile_kernel(%arg0: i32, %arg1: i32, %arg2: memref<56x2xf32, #tpu.memory_space<vmem>>, %arg3: memref<2x128xf32, #tpu.memory_space<vmem>>, %arg4: memref<56x1xf32, #tpu.memory_space<vmem>>, %arg5: memref<1x1x128xf32, #tpu.memory_space<vmem>>) attributes {dimension_semantics = [#tpu.dimension_semantics<parallel>, #tpu.dimension_semantics<arbitrary>], iteration_bounds = array<i64: 1, 1>, scalar_prefetch = 0 : i64, scratch_operands = 0 : i64, tpu.core_type = #tpu.core_type<tc>, window_params = [{transform_indices = @transform_0, window_bounds = array<i64: 56, 2>}, {transform_indices = @transform_1, window_bounds = array<i64: 2, 128>}, {transform_indices = @transform_2, window_bounds = array<i64: 56, 1>}, {transform_indices = @transform_3, window_bounds = array<i64: 1, 1, 128>}]} {
    %c0 = arith.constant 0 : index
    %c0_0 = arith.constant 0 : index
    %0 = vector.load %arg2[%c0, %c0_0] : memref<56x2xf32, #tpu.memory_space<vmem>>, vector<56x2xf32>
    %c0_1 = arith.constant 0 : index
    %c0_2 = arith.constant 0 : index
    %1 = vector.load %arg3[%c0_1, %c0_2] : memref<2x128xf32, #tpu.memory_space<vmem>>, vector<2x128xf32>
    %cst = arith.constant 0.000000e+00 : f32
    %2 = vector.broadcast %cst : f32 to vector<56x128xf32>
    %3 = vector.extract_strided_slice %0 {offsets = [0, 0], sizes = [56, 1], strides = [1, 1]} : vector<56x2xf32> to vector<56x1xf32>
    %4 = vector.extract_strided_slice %1 {offsets = [0, 0], sizes = [1, 128], strides = [1, 1]} : vector<2x128xf32> to vector<1x128xf32>
    %5 = vector.broadcast %3 : vector<56x1xf32> to vector<56x128xf32>
    %6 = vector.broadcast %4 : vector<1x128xf32> to vector<56x128xf32>
    %7 = arith.subf %5, %6 : vector<56x128xf32>
    %8 = arith.mulf %7, %7 : vector<56x128xf32>
    %9 = arith.addf %2, %8 : vector<56x128xf32>
    %10 = vector.extract_strided_slice %0 {offsets = [0, 1], sizes = [56, 1], strides = [1, 1]} : vector<56x2xf32> to vector<56x1xf32>
    %11 = vector.extract_strided_slice %1 {offsets = [1, 0], sizes = [1, 128], strides = [1, 1]} : vector<2x128xf32> to vector<1x128xf32>
    %12 = vector.broadcast %10 : vector<56x1xf32> to vector<56x128xf32>
    %13 = vector.broadcast %11 : vector<1x128xf32> to vector<56x128xf32>
    %14 = arith.subf %12, %13 : vector<56x128xf32>
    %15 = arith.mulf %14, %14 : vector<56x128xf32>
    %16 = arith.addf %9, %15 : vector<56x128xf32>
    %cst_3 = arith.constant dense<0x7F800000> : vector<56xf32>
    %17 = vector.multi_reduction <minimumf>, %16, %cst_3 [1] : vector<56x128xf32> to vector<56xf32>
    %18 = vector.shape_cast %17 : vector<56xf32> to vector<56x1xf32>
    %c0_i32 = arith.constant 0 : i32
    %19 = arith.cmpi eq, %arg1, %c0_i32 : i32
    %20 = arith.extui %19 : i1 to i32
    %c0_i32_4 = arith.constant 0 : i32
    %21 = arith.cmpi ne, %20, %c0_i32_4 : i32
    scf.if %21 {
      %cst_13 = arith.constant 0x7F800000 : f32
      %29 = vector.broadcast %cst_13 : f32 to vector<56x1xf32>
      %c0_14 = arith.constant 0 : index
      %c0_15 = arith.constant 0 : index
      %30 = vector.load %arg4[%c0_14, %c0_15] : memref<56x1xf32, #tpu.memory_space<vmem>>, vector<56x1xf32>
      tpu.vector_store %arg4[%c0_14, %c0_15], %29 {strides = array<i32>} : memref<56x1xf32, #tpu.memory_space<vmem>>, vector<56x1xf32>,
    } else {
    }
    %c0_5 = arith.constant 0 : index
    %c0_6 = arith.constant 0 : index
    %22 = vector.load %arg4[%c0_5, %c0_6] : memref<56x1xf32, #tpu.memory_space<vmem>>, vector<56x1xf32>
    %23 = arith.minimumf %22, %18 : vector<56x1xf32>
    %c0_7 = arith.constant 0 : index
    %c0_8 = arith.constant 0 : index
    %24 = vector.load %arg4[%c0_7, %c0_8] : memref<56x1xf32, #tpu.memory_space<vmem>>, vector<56x1xf32>
    tpu.vector_store %arg4[%c0_7, %c0_8], %23 {strides = array<i32>} : memref<56x1xf32, #tpu.memory_space<vmem>>, vector<56x1xf32>,
    %cst_9 = arith.constant dense<0x7F800000> : vector<128xf32>
    %25 = vector.multi_reduction <minimumf>, %16, %cst_9 [0] : vector<56x128xf32> to vector<128xf32>
    %26 = vector.shape_cast %25 : vector<128xf32> to vector<1x128xf32>
    %27 = vector.shape_cast %26 : vector<1x128xf32> to vector<1x1x128xf32>
    %c0_10 = arith.constant 0 : index
    %c0_11 = arith.constant 0 : index
    %c0_12 = arith.constant 0 : index
    %28 = vector.load %arg5[%c0_10, %c0_11, %c0_12] : memref<1x1x128xf32, #tpu.memory_space<vmem>>, vector<1x1x128xf32>
    tpu.vector_store %arg5[%c0_10, %c0_11, %c0_12], %27 {strides = array<i32>} : memref<1x1x128xf32, #tpu.memory_space<vmem>>, vector<1x1x128xf32>,
    return
  }
  func.func @transform_0(%arg0: i32, %arg1: i32) -> (i32, i32) {
    %c0_i32 = arith.constant 0 : i32
    %c0_i32_0 = arith.constant 0 : i32
    return %arg0, %c0_i32 : i32, i32
  }
  func.func @transform_1(%arg0: i32, %arg1: i32) -> (i32, i32) {
    %c0_i32 = arith.constant 0 : i32
    %c0_i32_0 = arith.constant 0 : i32
    return %c0_i32, %arg1 : i32, i32
  }
  func.func @transform_2(%arg0: i32, %arg1: i32) -> (i32, i32) {
    %c0_i32 = arith.constant 0 : i32
    %c0_i32_0 = arith.constant 0 : i32
    return %arg0, %c0_i32 : i32, i32
  }
  func.func @transform_3(%arg0: i32, %arg1: i32) -> (i32, i32, i32) {
    %c0_i32 = arith.constant 0 : i32
    %c0_i32_0 = arith.constant 0 : i32
    return %arg0, %c0_i32, %arg1 : i32, i32, i32
  }
}

</mosaic_0001>

<llo_original>
// kernel: averaged_hausdorff_loss.1
$region0: #{averaged_hausdorff_loss.1}
  #allocation0 [shape = 'u32[]', space=smem, size = 0x4, offset = 0x4, fixed_abs, tag = 'smem constant byte address 0x4 - core index']
  #allocation1 [shape = 'u32[72,128]{1,0:T(1,128)}', space=vmem, size = 0x9000, scoped, tag = 'internal scratch']
  %s0 = inlined_call_operand.vmem [shape: f32[56,2], index: 0, kind: input, shape index: {}]
  %s1 = inlined_call_operand.vmem [shape: f32[2,128], index: 1, kind: input, shape index: {}]
  %s2 = inlined_call_operand.vmem [shape: f32[56,1], index: 2, kind: output, shape index: {0}]
  %s3 = inlined_call_operand.vmem [shape: f32[1,1,128], index: 3, kind: output, shape index: {1}]
  %4 = xla_tuple %s2, %s3
  %s5 = sld [smem:[#allocation0]]
  $region30: #{averaged_hausdorff_loss.1} parent=0
    _
  %s7 = ssub.s32 1, %s5
  %s8 = scalar_select 0, %s7, %s5
  // Predicated region
  $region2: #{averaged_hausdorff_loss.1} parent=0 // pred_check
    _
  $region3: #{averaged_hausdorff_loss.1} parent=0 // pred_check_branch
    %10 = sbr.rel (0) target = $region5
  $region4: #{averaged_hausdorff_loss.1} parent=0 // pred_region
    _
  $region5: #{averaged_hausdorff_loss.1} parent=0 // pred_fallthru
    _
  // Predicated region
  $region6: #{averaged_hausdorff_loss.1} parent=0 // pred_check
    _
  $region7: #{averaged_hausdorff_loss.1} parent=0 // pred_check_branch
    %12 = sbr.rel (0) target = $region9
  $region8: #{averaged_hausdorff_loss.1} parent=0 // pred_region
    _
  $region9: #{averaged_hausdorff_loss.1} parent=0 // pred_fallthru
    _
  %v13 = vld [vmem:[%s0] sm:$0xff]
  %v14 = vld [vmem:[%s0 + $0x8] sm:$0xff]
  %v15 = vld [vmem:[%s0 + $0x10] sm:$0xff]
  %v16 = vld [vmem:[%s0 + $0x18] sm:$0xff]
  %v17 = vld [vmem:[%s0 + $0x20] sm:$0xff]
  %v18 = vld [vmem:[%s0 + $0x28] sm:$0xff]
  %v19 = vld [vmem:[%s0 + $0x30] sm:$0xff]
  %v20 = vld [vmem:[%s1] sm:$0x3]
  %22 = vset.pattern.permute.xlu0 0
  %23 = vperm.xlu0 %22, %v13
  %v24 = vpop.permute.xlu0 %23
  %27 = vset.pattern.permute.xlu0 0
  %28 = vperm.xlu0 %27, %v14
  %v29 = vpop.permute.xlu0 %28
  %32 = vset.pattern.permute.xlu0 0
  %33 = vperm.xlu0 %32, %v15
  %v34 = vpop.permute.xlu0 %33
  %37 = vset.pattern.permute.xlu0 0
  %38 = vperm.xlu0 %37, %v16
  %v39 = vpop.permute.xlu0 %38
  %42 = vset.pattern.permute.xlu0 0
  %43 = vperm.xlu0 %42, %v17
  %v44 = vpop.permute.xlu0 %43
  %47 = vset.pattern.permute.xlu0 0
  %48 = vperm.xlu0 %47, %v18
  %v49 = vpop.permute.xlu0 %48
  %52 = vset.pattern.permute.xlu0 0
  %53 = vperm.xlu0 %52, %v19
  %v54 = vpop.permute.xlu0 %53
  %v56 = vperm.slane %v20, 0
  %v57 = vsub.f32 %v24, %v56
  %v58 = vsub.f32 %v29, %v56
  %v59 = vsub.f32 %v34, %v56
  %v60 = vsub.f32 %v39, %v56
  %v61 = vsub.f32 %v44, %v56
  %v62 = vsub.f32 %v49, %v56
  %v63 = vsub.f32 %v54, %v56
  %v64 = vmul.f32 %v57, %v57
  %v65 = vmul.f32 %v58, %v58
  %v66 = vmul.f32 %v59, %v59
  %v67 = vmul.f32 %v60, %v60
  %v68 = vmul.f32 %v61, %v61
  %v69 = vmul.f32 %v62, %v62
  %v70 = vmul.f32 %v63, %v63
  %v71 = vadd.f32 %v64, 0.0
  %v72 = vadd.f32 %v65, 0.0
  %v73 = vadd.f32 %v66, 0.0
  %v74 = vadd.f32 %v67, 0.0
  %v75 = vadd.f32 %v68, 0.0
  %v76 = vadd.f32 %v69, 0.0
  %v77 = vadd.f32 %v70, 0.0
  %78 = vset.pattern.permute.xlu0 1
  %79 = vperm.xlu0 %78, %v13
  %v80 = vpop.permute.xlu0 %79
  %82 = vset.pattern.permute.xlu0 1
  %83 = vperm.xlu0 %82, %v14
  %v84 = vpop.permute.xlu0 %83
  %86 = vset.pattern.permute.xlu0 1
  %87 = vperm.xlu0 %86, %v15
  %v88 = vpop.permute.xlu0 %87
  %90 = vset.pattern.permute.xlu0 1
  %91 = vperm.xlu0 %90, %v16
  %v92 = vpop.permute.xlu0 %91
  %94 = vset.pattern.permute.xlu0 1
  %95 = vperm.xlu0 %94, %v17
  %v96 = vpop.permute.xlu0 %95
  %98 = vset.pattern.permute.xlu0 1
  %99 = vperm.xlu0 %98, %v18
  %v100 = vpop.permute.xlu0 %99
  %102 = vset.pattern.permute.xlu0 1
  %103 = vperm.xlu0 %102, %v19
  %v104 = vpop.permute.xlu0 %103
  %v106 = vperm.slane %v20, 1
  %v107 = vsub.f32 %v80, %v106
  %v108 = vsub.f32 %v84, %v106
  %v109 = vsub.f32 %v88, %v106
  %v110 = vsub.f32 %v92, %v106
  %v111 = vsub.f32 %v96, %v106
  %v112 = vsub.f32 %v100, %v106
  %v113 = vsub.f32 %v104, %v106
  %v114 = vmul.f32 %v107, %v107
  %v115 = vmul.f32 %v108, %v108
  %v116 = vmul.f32 %v109, %v109
  %v117 = vmul.f32 %v110, %v110
  %v118 = vmul.f32 %v111, %v111
  %v119 = vmul.f32 %v112, %v112
  %v120 = vmul.f32 %v113, %v113
  %v121 = vadd.f32 %v71, %v114
  %v122 = vadd.f32 %v72, %v115
  %v123 = vadd.f32 %v73, %v116
  %v124 = vadd.f32 %v74, %v117
  %v125 = vadd.f32 %v75, %v118
  %v126 = vadd.f32 %v76, %v119
  %v127 = vadd.f32 %v77, %v120
  %128 = vmin.xlane.f32.xlu0 %v121
  %v129 = vpop.xlane.xlu0 %128
  %130 = vmin.xlane.f32.xlu0 %v122
  %v131 = vpop.xlane.xlu0 %130
  %132 = vmin.xlane.f32.xlu0 %v123
  %v133 = vpop.xlane.xlu0 %132
  %134 = vmin.xlane.f32.xlu0 %v124
  %v135 = vpop.xlane.xlu0 %134
  %136 = vmin.xlane.f32.xlu0 %v125
  %v137 = vpop.xlane.xlu0 %136
  %138 = vmin.xlane.f32.xlu0 %v126
  %v139 = vpop.xlane.xlu0 %138
  %140 = vmin.xlane.f32.xlu0 %v127
  %v141 = vpop.xlane.xlu0 %140
  %p142 = scmp.eq.s32.totalorder 0, 0
  // Predicated region
  $region10: #{averaged_hausdorff_loss.1} parent=0 // pred_check
    %p143 = pneg %p142
  $region11: #{averaged_hausdorff_loss.1} parent=0 // pred_check_branch
    %145 = sbr.rel (%p143) target = $region13
  $region12: #{averaged_hausdorff_loss.1} parent=0 // pred_region
    %vm146 = vcmask 7168
    %147 = vst.msk [vmem:[%s2] sm:$0xff] %vm146, inf
    %148 = vst.msk [vmem:[%s2 + $0x8] sm:$0xff] %vm146, inf
    %149 = vst.msk [vmem:[%s2 + $0x10] sm:$0xff] %vm146, inf
    %150 = vst.msk [vmem:[%s2 + $0x18] sm:$0xff] %vm146, inf
    %151 = vst.msk [vmem:[%s2 + $0x20] sm:$0xff] %vm146, inf
    %152 = vst.msk [vmem:[%s2 + $0x28] sm:$0xff] %vm146, inf
    %153 = vst.msk [vmem:[%s2 + $0x30] sm:$0xff] %vm146, inf
  $region13: #{averaged_hausdorff_loss.1} parent=0 // pred_fallthru
    _
  %v154 = vld [vmem:[%s2] sm:$0xff]
  %v155 = vld [vmem:[%s2 + $0x8] sm:$0xff]
  %v156 = vld [vmem:[%s2 + $0x10] sm:$0xff]
  %v157 = vld [vmem:[%s2 + $0x18] sm:$0xff]
  %v158 = vld [vmem:[%s2 + $0x20] sm:$0xff]
  %v159 = vld [vmem:[%s2 + $0x28] sm:$0xff]
  %v160 = vld [vmem:[%s2 + $0x30] sm:$0xff]
  %v161 = vmin.f32 %v154, %v129
  %v162 = vmin.f32 %v155, %v131
  %v163 = vmin.f32 %v156, %v133
  %v164 = vmin.f32 %v157, %v135
  %v165 = vmin.f32 %v158, %v137
  %v166 = vmin.f32 %v159, %v139
  %v167 = vmin.f32 %v160, %v141
  %vm168 = vcmask 7168
  %169 = vst.msk [vmem:[%s2] sm:$0xff] %vm168, %v161
  %170 = vst.msk [vmem:[%s2 + $0x8] sm:$0xff] %vm168, %v162
  %171 = vst.msk [vmem:[%s2 + $0x10] sm:$0xff] %vm168, %v163
  %172 = vst.msk [vmem:[%s2 + $0x18] sm:$0xff] %vm168, %v164
  %173 = vst.msk [vmem:[%s2 + $0x20] sm:$0xff] %vm168, %v165
  %174 = vst.msk [vmem:[%s2 + $0x28] sm:$0xff] %vm168, %v166
  %175 = vst.msk [vmem:[%s2 + $0x30] sm:$0xff] %vm168, %v167
  %v176 = vmin.f32 %v121, %v125
  %v177 = vmin.f32 %v122, %v126
  %v178 = vmin.f32 %v123, %v127
  %v179 = vmin.f32 %v176, %v177
  %v180 = vmin.f32 %v178, %v124
  %v181 = vmin.f32 %v179, %v180
  %v182 = vrot.slane %v181, 4
  %v183 = vmin.f32 %v181, %v182
  %v184 = vrot.slane %v183, 2
  %v185 = vmin.f32 %v183, %v184
  %v186 = vrot.slane %v185, 1
  %v187 = vmin.f32 %v185, %v186
  %188 = vst [vmem:[%s3] sm:$0x1] %v187
  // Predicated region
  $region14: #{averaged_hausdorff_loss.1} parent=0 // pred_check
    _
  $region15: #{averaged_hausdorff_loss.1} parent=0 // pred_check_branch
    %190 = sbr.rel (0) target = $region17
  $region16: #{averaged_hausdorff_loss.1} parent=0 // pred_region
    _
  $region17: #{averaged_hausdorff_loss.1} parent=0 // pred_fallthru
    _
  // Predicated region
  $region18: #{averaged_hausdorff_loss.1} parent=0 // pred_check
    _
  $region19: #{averaged_hausdorff_loss.1} parent=0 // pred_check_branch
    %192 = sbr.rel (0) target = $region21
  $region20: #{averaged_hausdorff_loss.1} parent=0 // pred_region
    _
  $region21: #{averaged_hausdorff_loss.1} parent=0 // pred_fallthru
    _
  // Predicated region
  $region22: #{averaged_hausdorff_loss.1} parent=0 // pred_check
    _
  $region23: #{averaged_hausdorff_loss.1} parent=0 // pred_check_branch
    %194 = sbr.rel (0) target = $region25
  $region24: #{averaged_hausdorff_loss.1} parent=0 // pred_region
    _
  $region25: #{averaged_hausdorff_loss.1} parent=0 // pred_fallthru
    _
  // Predicated region
  $region26: #{averaged_hausdorff_loss.1} parent=0 // pred_check
    _
  $region27: #{averaged_hausdorff_loss.1} parent=0 // pred_check_branch
    %196 = sbr.rel (0) target = $region29
  $region28: #{averaged_hausdorff_loss.1} parent=0 // pred_region
    _
  $region29: #{averaged_hausdorff_loss.1} parent=0 // pred_fallthru
    _

</llo_original>
